<compile_context>
chip_gen: v7x
topology: tpu7x:2x2x1
jax: 0.10.0
libtpu: 0.0.40
codegen_flags: <defaults>
</compile_context>

<pallas_src>
import functools

import jax
import jax.numpy as jnp
import numpy as np
from jax import lax
from jax.experimental import pallas as pl
from jax.experimental.pallas import tpu as pltpu


def _linattn_kernel(x_ref, wqkv_ref, wo_ref, bias_ref, o_ref, *,
                    heads, dim_head, compute_dtype):
    x = x_ref[0]              # (C, N)           compute_dtype
    wqkv = wqkv_ref[...]      # (3*H*Dh, C)      compute_dtype
    bias = bias_ref[...]      # (dim, 1)         f32

    # Fused qkv projection (1x1 conv == channel matmul), f32 accumulation.
    qkv = lax.dot_general(wqkv, x, (((1,), (0,)), ((), ())),
                          preferred_element_type=jnp.float32)  # (3*H*Dh, N)

    hd = heads * dim_head
    q_all = qkv[:hd, :]            # (H*Dh, N) f32
    k_all = qkv[hd:2 * hd, :]      # (H*Dh, N) f32
    v_all = qkv[2 * hd:, :]        # (H*Dh, N) f32

    # Softmax over the sequence (lane) axis, vectorized over all heads at once.
    k_all = k_all - jnp.max(k_all, axis=-1, keepdims=True)
    k_all = jnp.exp(k_all)
    k_all = k_all * pl.reciprocal(jnp.sum(k_all, axis=-1, keepdims=True),
                                  approx=True)

    q_c = q_all.astype(compute_dtype)
    k_c = k_all.astype(compute_dtype)
    v_c = v_all.astype(compute_dtype)

    y_acc = None
    for h in range(heads):  # static, unrolled at trace time
        lo = h * dim_head
        q = q_c[lo:lo + dim_head, :]     # (Dh, N)
        k = k_c[lo:lo + dim_head, :]     # (Dh, N)
        v = v_c[lo:lo + dim_head, :]     # (Dh, N)
        wo_h = wo_ref[h]                 # (dim, Dh)  compute_dtype

        # context[d, e] = sum_n k[d, n] * v[e, n]   (contract lane axes, no .T)
        context = lax.dot_general(k, v, (((1,), (1,)), ((), ())),
                                  preferred_element_type=jnp.float32)  # (Dh, Dh)

        # Fold the 1x1 out-projection through the attention:
        #   m[o, d] = sum_e wo_h[o, e] * context[d, e]
        m = lax.dot_general(wo_h, context.astype(compute_dtype),
                            (((1,), (1,)), ((), ())),
                            preferred_element_type=jnp.float32)        # (dim, Dh)

        #   y_h[o, n] = sum_d m[o, d] * q[d, n]
        y_h = lax.dot_general(m.astype(compute_dtype), q,
                              (((1,), (0,)), ((), ())),
                              preferred_element_type=jnp.float32)      # (dim, N)

        y_acc = y_h if y_acc is None else y_acc + y_h

    # Single lane-dense store per batch step.
    o_ref[0] = y_acc + bias


def linear_attention_pallas(x_nchw, w_qkv, w_out, b_out, *, heads, dim_head,
                            compute_dtype=jnp.bfloat16,
                            vmem_limit_bytes=None):
    B, C, H, W = x_nchw.shape
    N = H * W
    dim = w_out.shape[0]
    hidden = heads * dim_head
    assert w_qkv.shape == (3 * hidden, C)
    assert w_out.shape == (dim, hidden)

    # Lane-dense layout: N = H*W on lanes.
    x = x_nchw.reshape(B, C, N).astype(compute_dtype)
    wqkv = w_qkv.astype(compute_dtype)                      # (3*H*Dh, C)
    # Pre-split the output projection per head -> kernel indexes leading axis.
    wo_heads = w_out.reshape(dim, heads, dim_head).transpose(1, 0, 2)
    wo_heads = wo_heads.astype(compute_dtype)               # (heads, dim, Dh)
    bias = b_out.reshape(dim, 1).astype(jnp.float32)

    kernel = functools.partial(_linattn_kernel, heads=heads,
                               dim_head=dim_head, compute_dtype=compute_dtype)

    # TODO(synk): for very large N (full-res diffusion on v7x's 64 MiB VMEM)
    # add a lane-tiled N grid axis with online-softmax rescaling of k/context.
    compiler_params = pltpu.CompilerParams(
        dimension_semantics=("parallel",),
        vmem_limit_bytes=vmem_limit_bytes)

    out = pl.pallas_call(
        kernel,
        out_shape=jax.ShapeDtypeStruct((B, dim, N), jnp.float32),
        grid_spec=pltpu.PrefetchScalarGridSpec(
            num_scalar_prefetch=0,
            grid=(B,),
            in_specs=[
                pl.BlockSpec((1, C, N), lambda b: (b, 0, 0)),
                pl.BlockSpec((3 * hidden, C), lambda b: (0, 0)),
                pl.BlockSpec((heads, dim, dim_head), lambda b: (0, 0, 0)),
                pl.BlockSpec((dim, 1), lambda b: (0, 0)),
            ],
            out_specs=pl.BlockSpec((1, dim, N), lambda b: (b, 0, 0)),
        ),
        compiler_params=compiler_params,
    )(x, wqkv, wo_heads, bias)

    return out.reshape(B, dim, H, W)


def linear_attention_ref(x, w_qkv, w_out, b_out, *, heads, dim_head):
    """Pure-JAX reference matching the PyTorch module semantics."""
    B, C, H, W = x.shape
    N = H * W
    dim = w_out.shape[0]
    qkv = jnp.einsum('oc,bcn->bon', w_qkv, x.reshape(B, C, N))
    qkv = qkv.reshape(B, 3, heads, dim_head, N)
    q, k, v = qkv[:, 0], qkv[:, 1], qkv[:, 2]
    k = jax.nn.softmax(k, axis=-1)
    context = jnp.einsum('bhdn,bhen->bhde', k, v)
    out = jnp.einsum('bhde,bhdn->bhen', context, q)
    out = out.reshape(B, heads * dim_head, N)
    out = jnp.einsum('oc,bcn->bon', w_out, out) + b_out.reshape(1, dim, 1)
    return out.reshape(B, dim, H, W)


if __name__ == "__main__":
    # Small shapes consistent with the module's forward.
    B, DIM, H, W = 2, 4, 16, 16
    HEADS, DIM_HEAD = 2, 32
    HIDDEN = HEADS * DIM_HEAD

    key = jax.random.PRNGKey(0)
    kx, kqkv, kwo, kbo = jax.random.split(key, 4)

    x = jax.random.normal(kx, (B, DIM, H, W), dtype=jnp.float32)
    # to_qkv: Conv2d(dim, hidden*3, 1, bias=False) -> weight (hidden*3, dim)
    w_qkv = 0.2 * jax.random.normal(kqkv, (3 * HIDDEN, DIM), dtype=jnp.float32)
    # to_out: Conv2d(hidden, dim, 1) -> weight (dim, hidden), bias (dim,)
    w_out = 0.2 * jax.random.normal(kwo, (DIM, HIDDEN), dtype=jnp.float32)
    b_out = 0.1 * jax.random.normal(kbo, (DIM,), dtype=jnp.float32)

    run = jax.jit(functools.partial(
        linear_attention_pallas, heads=HEADS, dim_head=DIM_HEAD))
    y = run(x, w_qkv, w_out, b_out)
    jax.block_until_ready(y)

    y_ref = linear_attention_ref(x, w_qkv, w_out, b_out,
                                 heads=HEADS, dim_head=DIM_HEAD)
    np.testing.assert_allclose(np.asarray(y), np.asarray(y_ref),
                               rtol=2e-2, atol=2e-2)
    print("KERNEL_OK")
</pallas_src>

<mosaic_0001>
module attributes {stable_mosaic.version = 11 : i64} {
  func.func @_linattn_kernel(%arg0: i32, %arg1: memref<1x4x256xbf16, #tpu.memory_space<vmem>>, %arg2: memref<192x4xbf16, #tpu.memory_space<vmem>>, %arg3: memref<2x4x32xbf16, #tpu.memory_space<vmem>>, %arg4: memref<4x1xf32, #tpu.memory_space<vmem>>, %arg5: memref<1x4x256xf32, #tpu.memory_space<vmem>>) attributes {dimension_semantics = [#tpu.dimension_semantics<parallel>], iteration_bounds = array<i64: 2>, scalar_prefetch = 0 : i64, scratch_operands = 0 : i64, tpu.core_type = #tpu.core_type<tc>, window_params = [{transform_indices = @transform_0, window_bounds = array<i64: 1, 4, 256>}, {pipeline_mode = #tpu.pipeline_mode<synchronous>, transform_indices = @transform_1, window_bounds = array<i64: 192, 4>}, {pipeline_mode = #tpu.pipeline_mode<synchronous>, transform_indices = @transform_2, window_bounds = array<i64: 2, 4, 32>}, {pipeline_mode = #tpu.pipeline_mode<synchronous>, transform_indices = @transform_3, window_bounds = array<i64: 4, 1>}, {transform_indices = @transform_4, window_bounds = array<i64: 1, 4, 256>}]} {
    %c0 = arith.constant 0 : index
    %c0_0 = arith.constant 0 : index
    %c0_1 = arith.constant 0 : index
    %0 = vector.load %arg1[%c0, %c0_0, %c0_1] : memref<1x4x256xbf16, #tpu.memory_space<vmem>>, vector<1x4x256xbf16>
    %1 = vector.shape_cast %0 : vector<1x4x256xbf16> to vector<4x256xbf16>
    %c0_2 = arith.constant 0 : index
    %c0_3 = arith.constant 0 : index
    %2 = vector.load %arg2[%c0_2, %c0_3] : memref<192x4xbf16, #tpu.memory_space<vmem>>, vector<192x4xbf16>
    %c0_4 = arith.constant 0 : index
    %c0_5 = arith.constant 0 : index
    %3 = vector.load %arg4[%c0_4, %c0_5] : memref<4x1xf32, #tpu.memory_space<vmem>>, vector<4x1xf32>
    %cst = arith.constant dense<0.000000e+00> : vector<192x256xf32>
    %4 = tpu.matmul %2, %1, %cst {dimension_numbers = #tpu.dot_dimension_numbers<[1], [0], [0], [1], [0, 0, 1, 1], [], []>} : vector<192x4xbf16>, vector<4x256xbf16>, vector<192x256xf32> -> vector<192x256xf32>
    %5 = vector.extract_strided_slice %4 {offsets = [0, 0], sizes = [64, 256], strides = [1, 1]} : vector<192x256xf32> to vector<64x256xf32>
    %6 = vector.extract_strided_slice %4 {offsets = [64, 0], sizes = [64, 256], strides = [1, 1]} : vector<192x256xf32> to vector<64x256xf32>
    %7 = vector.extract_strided_slice %4 {offsets = [128, 0], sizes = [64, 256], strides = [1, 1]} : vector<192x256xf32> to vector<64x256xf32>
    %cst_6 = arith.constant dense<0xFF800000> : vector<64xf32>
    %8 = vector.multi_reduction <maximumf>, %6, %cst_6 [1] : vector<64x256xf32> to vector<64xf32>
    %9 = vector.shape_cast %8 : vector<64xf32> to vector<64x1xf32>
    %10 = vector.broadcast %9 : vector<64x1xf32> to vector<64x256xf32>
    %11 = arith.subf %6, %10 : vector<64x256xf32>
    %12 = math.exp %11 : vector<64x256xf32>
    %cst_7 = arith.constant dense<0.000000e+00> : vector<64xf32>
    %13 = vector.multi_reduction <add>, %12, %cst_7 [1] : vector<64x256xf32> to vector<64xf32>
    %14 = vector.shape_cast %13 : vector<64xf32> to vector<64x1xf32>
    %15 = tpu.reciprocal %14 {approx = true} : vector<64x1xf32> -> vector<64x1xf32>
    %16 = vector.broadcast %15 : vector<64x1xf32> to vector<64x256xf32>
    %17 = arith.mulf %12, %16 : vector<64x256xf32>
    %18 = arith.truncf %5 : vector<64x256xf32> to vector<64x256xbf16>
    %19 = arith.truncf %17 : vector<64x256xf32> to vector<64x256xbf16>
    %20 = arith.truncf %7 : vector<64x256xf32> to vector<64x256xbf16>
    %21 = vector.extract_strided_slice %18 {offsets = [0, 0], sizes = [32, 256], strides = [1, 1]} : vector<64x256xbf16> to vector<32x256xbf16>
    %22 = vector.extract_strided_slice %19 {offsets = [0, 0], sizes = [32, 256], strides = [1, 1]} : vector<64x256xbf16> to vector<32x256xbf16>
    %23 = vector.extract_strided_slice %20 {offsets = [0, 0], sizes = [32, 256], strides = [1, 1]} : vector<64x256xbf16> to vector<32x256xbf16>
    %c0_8 = arith.constant 0 : index
    %c0_9 = arith.constant 0 : index
    %c0_10 = arith.constant 0 : index
    %24 = vector.load %arg3[%c0_8, %c0_9, %c0_10] : memref<2x4x32xbf16, #tpu.memory_space<vmem>>, vector<1x4x32xbf16>
    %25 = vector.shape_cast %24 : vector<1x4x32xbf16> to vector<4x32xbf16>
    %cst_11 = arith.constant dense<0.000000e+00> : vector<32x32xf32>
    %26 = tpu.matmul %22, %23, %cst_11 {dimension_numbers = #tpu.dot_dimension_numbers<[1], [1], [0], [0], [0, 0, 1, 0], [], []>} : vector<32x256xbf16>, vector<32x256xbf16>, vector<32x32xf32> -> vector<32x32xf32>
    %27 = arith.truncf %26 : vector<32x32xf32> to vector<32x32xbf16>
    %cst_12 = arith.constant dense<0.000000e+00> : vector<4x32xf32>
    %28 = tpu.matmul %25, %27, %cst_12 {dimension_numbers = #tpu.dot_dimension_numbers<[1], [1], [0], [0], [0, 0, 1, 0], [], []>} : vector<4x32xbf16>, vector<32x32xbf16>, vector<4x32xf32> -> vector<4x32xf32>
    %29 = arith.truncf %28 : vector<4x32xf32> to vector<4x32xbf16>
    %cst_13 = arith.constant dense<0.000000e+00> : vector<4x256xf32>
    %30 = tpu.matmul %29, %21, %cst_13 {dimension_numbers = #tpu.dot_dimension_numbers<[1], [0], [0], [1], [0, 0, 1, 1], [], []>} : vector<4x32xbf16>, vector<32x256xbf16>, vector<4x256xf32> -> vector<4x256xf32>
    %31 = vector.extract_strided_slice %18 {offsets = [32, 0], sizes = [32, 256], strides = [1, 1]} : vector<64x256xbf16> to vector<32x256xbf16>
    %32 = vector.extract_strided_slice %19 {offsets = [32, 0], sizes = [32, 256], strides = [1, 1]} : vector<64x256xbf16> to vector<32x256xbf16>
    %33 = vector.extract_strided_slice %20 {offsets = [32, 0], sizes = [32, 256], strides = [1, 1]} : vector<64x256xbf16> to vector<32x256xbf16>
    %c1 = arith.constant 1 : index
    %c0_14 = arith.constant 0 : index
    %c0_15 = arith.constant 0 : index
    %34 = vector.load %arg3[%c1, %c0_14, %c0_15] : memref<2x4x32xbf16, #tpu.memory_space<vmem>>, vector<1x4x32xbf16>
    %35 = vector.shape_cast %34 : vector<1x4x32xbf16> to vector<4x32xbf16>
    %cst_16 = arith.constant dense<0.000000e+00> : vector<32x32xf32>
    %36 = tpu.matmul %32, %33, %cst_16 {dimension_numbers = #tpu.dot_dimension_numbers<[1], [1], [0], [0], [0, 0, 1, 0], [], []>} : vector<32x256xbf16>, vector<32x256xbf16>, vector<32x32xf32> -> vector<32x32xf32>
    %37 = arith.truncf %36 : vector<32x32xf32> to vector<32x32xbf16>
    %cst_17 = arith.constant dense<0.000000e+00> : vector<4x32xf32>
    %38 = tpu.matmul %35, %37, %cst_17 {dimension_numbers = #tpu.dot_dimension_numbers<[1], [1], [0], [0], [0, 0, 1, 0], [], []>} : vector<4x32xbf16>, vector<32x32xbf16>, vector<4x32xf32> -> vector<4x32xf32>
    %39 = arith.truncf %38 : vector<4x32xf32> to vector<4x32xbf16>
    %cst_18 = arith.constant dense<0.000000e+00> : vector<4x256xf32>
    %40 = tpu.matmul %39, %31, %cst_18 {dimension_numbers = #tpu.dot_dimension_numbers<[1], [0], [0], [1], [0, 0, 1, 1], [], []>} : vector<4x32xbf16>, vector<32x256xbf16>, vector<4x256xf32> -> vector<4x256xf32>
    %41 = arith.addf %30, %40 : vector<4x256xf32>
    %42 = vector.broadcast %3 : vector<4x1xf32> to vector<4x256xf32>
    %43 = arith.addf %41, %42 : vector<4x256xf32>
    %c0_19 = arith.constant 0 : index
    %c0_20 = arith.constant 0 : index
    %c0_21 = arith.constant 0 : index
    %44 = vector.load %arg5[%c0_19, %c0_20, %c0_21] : memref<1x4x256xf32, #tpu.memory_space<vmem>>, vector<1x4x256xf32>
    %45 = vector.shape_cast %44 : vector<1x4x256xf32> to vector<4x256xf32>
    %46 = vector.shape_cast %43 : vector<4x256xf32> to vector<1x4x256xf32>
    tpu.vector_store %arg5[%c0_19, %c0_20, %c0_21], %46 {strides = array<i32>} : memref<1x4x256xf32, #tpu.memory_space<vmem>>, vector<1x4x256xf32>,
    return
  }
  func.func @transform_0(%arg0: i32) -> (i32, i32, i32) {
    %c0_i32 = arith.constant 0 : i32
    %c0_i32_0 = arith.constant 0 : i32
    %c0_i32_1 = arith.constant 0 : i32
    return %arg0, %c0_i32, %c0_i32_0 : i32, i32, i32
  }
  func.func @transform_1(%arg0: i32) -> (i32, i32) {
    %c0_i32 = arith.constant 0 : i32
    %c0_i32_0 = arith.constant 0 : i32
    %c0_i32_1 = arith.constant 0 : i32
    return %c0_i32, %c0_i32_0 : i32, i32
  }
  func.func @transform_2(%arg0: i32) -> (i32, i32, i32) {
    %c0_i32 = arith.constant 0 : i32
    %c0_i32_0 = arith.constant 0 : i32
    %c0_i32_1 = arith.constant 0 : i32
    %c0_i32_2 = arith.constant 0 : i32
    return %c0_i32, %c0_i32_0, %c0_i32_1 : i32, i32, i32
  }
  func.func @transform_3(%arg0: i32) -> (i32, i32) {
    %c0_i32 = arith.constant 0 : i32
    %c0_i32_0 = arith.constant 0 : i32
    %c0_i32_1 = arith.constant 0 : i32
    return %c0_i32, %c0_i32_0 : i32, i32
  }
  func.func @transform_4(%arg0: i32) -> (i32, i32, i32) {
    %c0_i32 = arith.constant 0 : i32
    %c0_i32_0 = arith.constant 0 : i32
    %c0_i32_1 = arith.constant 0 : i32
    return %arg0, %c0_i32, %c0_i32_0 : i32, i32, i32
  }
}

</mosaic_0001>

<llo_original>
// kernel: linear_attention_pallas.1
$region0: #{linear_attention_pallas.1}
  #allocation0 [shape = 'u32[]', space=smem, size = 0x4, offset = 0x4, fixed_abs, tag = 'smem constant byte address 0x4 - core index']
  #allocation1 [shape = 'u32[144,128]{1,0:T(1,128)}', space=vmem, size = 0x12000, scoped, tag = 'internal scratch']
  %s0 = inlined_call_operand.vmem [shape: bf16[2,4,256], index: 0, kind: input, shape index: {}]
  %s1 = inlined_call_operand.vmem [shape: bf16[192,4], index: 1, kind: input, shape index: {}]
  %s2 = inlined_call_operand.vmem [shape: bf16[2,4,32], index: 2, kind: input, shape index: {}]
  %s3 = inlined_call_operand.vmem [shape: f32[4,1], index: 3, kind: input, shape index: {}]
  %s4 = inlined_call_operand.vmem [shape: f32[2,4,256], index: 4, kind: output, shape index: {}]
  %s5 = sld [smem:[#allocation0]]
  $region49: #{linear_attention_pallas.1} parent=0
    _
  %s7 = ssub.s32 1, %s5
  %s8 = scalar_select 0, %s7, %s5
  loop: start=0, step=1, limit=4
  $region2: #{linear_attention_pallas.1} parent=0 // loop_pre_header
    _
  $region3: #{linear_attention_pallas.1} parent=0 // loop_header
    %s10 = sphi 0, %s14
    %p11 = scmp.ge.s32.totalorder %s10, 4
    %s20 = sphi 0, %s22
    %s23 = sphi 0, %s20
    %s24 = sphi 0, %s23
    %s40 = sphi 0, %s24
    %s44 = sphi 0, %s44
    %s46 = sphi 0, %s44
    %s47 = sphi 0, %s46
    %s61 = sphi 0, %s47
    %s65 = sphi 0, %s65
    %s67 = sphi 0, %s65
    %s68 = sphi 0, %s67
    %s82 = sphi 0, %s68
    %s86 = sphi 0, %s86
    %s88 = sphi 0, %s86
    %s89 = sphi 0, %s88
    %s103 = sphi 0, %s89
    %s109 = sphi 0, %s111
    %s112 = sphi 0, %s109
    %s113 = sphi 0, %s112
    %s129 = sphi 0, %s113
  $region4: #{linear_attention_pallas.1} parent=0 // loop_header_branch
    %13 = sbr.rel (%p11) target = $region8
  $region5: #{linear_attention_pallas.1} parent=0 // loop_body
    %s15 = ssub.s32 %s10, 1
    %s16 = ssub.s32 %s10, 2
    %s17 = sadd.s32 %s10, 1
    %s18 = ssub.s32 %s10, %s17
    %p19 = scmp.eq.s32.totalorder %s18, 0
    %s21 = sadd.s32 %s20, 1
    %s22 = scalar_select %p19, %s20, %s21
    %p25 = pneg %p19
    %p26 = scmp.eq.s32.totalorder %s10, 1
    %p27 = por %p25, %p26
    %p28 = scmp.ne.s32.totalorder %s20, %s23
    %p29 = scmp.eq.s32.totalorder %s10, 0
    %p30 = por %p28, %p29
    %p31 = scmp.ne.s32.totalorder %s20, %s23
    %p32 = scmp.eq.s32.totalorder %s15, 1
    %p33 = por %p31, %p32
    %p34 = scmp.ne.s32.totalorder %s23, %s24
    %p35 = scmp.eq.s32.totalorder %s15, 0
    %p36 = por %p34, %p35
    %p37 = scmp.ne.s32.totalorder %s23, %s24
    %p38 = scmp.eq.s32.totalorder %s16, 1
    %p39 = por %p37, %p38
    %p41 = scmp.ne.s32.totalorder %s24, %s40
    %p42 = scmp.eq.s32.totalorder %s16, 0
    %p43 = por %p41, %p42
    %s45 = sadd.s32 %s44, 1
    %p48 = scmp.eq.s32.totalorder %s10, 1
    %p49 = scmp.ne.s32.totalorder %s44, %s46
    %p50 = scmp.eq.s32.totalorder %s10, 0
    %p51 = por %p49, %p50
    %p52 = scmp.ne.s32.totalorder %s44, %s46
    %p53 = scmp.eq.s32.totalorder %s15, 1
    %p54 = por %p52, %p53
    %p55 = scmp.ne.s32.totalorder %s46, %s47
    %p56 = scmp.eq.s32.totalorder %s15, 0
    %p57 = por %p55, %p56
    %p58 = scmp.ne.s32.totalorder %s46, %s47
    %p59 = scmp.eq.s32.totalorder %s16, 1
    %p60 = por %p58, %p59
    %p62 = scmp.ne.s32.totalorder %s47, %s61
    %p63 = scmp.eq.s32.totalorder %s16, 0
    %p64 = por %p62, %p63
    %s66 = sadd.s32 %s65, 1
    %p69 = scmp.eq.s32.totalorder %s10, 1
    %p70 = scmp.ne.s32.totalorder %s65, %s67
    %p71 = scmp.eq.s32.totalorder %s10, 0
    %p72 = por %p70, %p71
    %p73 = scmp.ne.s32.totalorder %s65, %s67
    %p74 = scmp.eq.s32.totalorder %s15, 1
    %p75 = por %p73, %p74
    %p76 = scmp.ne.s32.totalorder %s67, %s68
    %p77 = scmp.eq.s32.totalorder %s15, 0
    %p78 = por %p76, %p77
    %p79 = scmp.ne.s32.totalorder %s67, %s68
    %p80 = scmp.eq.s32.totalorder %s16, 1
    %p81 = por %p79, %p80
    %p83 = scmp.ne.s32.totalorder %s68, %s82
    %p84 = scmp.eq.s32.totalorder %s16, 0
    %p85 = por %p83, %p84
    %s87 = sadd.s32 %s86, 1
    %p90 = scmp.eq.s32.totalorder %s10, 1
    %p91 = scmp.ne.s32.totalorder %s86, %s88
    %p92 = scmp.eq.s32.totalorder %s10, 0
    %p93 = por %p91, %p92
    %p94 = scmp.ne.s32.totalorder %s86, %s88
    %p95 = scmp.eq.s32.totalorder %s15, 1
    %p96 = por %p94, %p95
    %p97 = scmp.ne.s32.totalorder %s88, %s89
    %p98 = scmp.eq.s32.totalorder %s15, 0
    %p99 = por %p97, %p98
    %p100 = scmp.ne.s32.totalorder %s88, %s89
    %p101 = scmp.eq.s32.totalorder %s16, 1
    %p102 = por %p100, %p101
    %p104 = scmp.ne.s32.totalorder %s89, %s103
    %p105 = scmp.eq.s32.totalorder %s16, 0
    %p106 = por %p104, %p105
    %s107 = ssub.s32 %s10, %s17
    %p108 = scmp.eq.s32.totalorder %s107, 0
    %s110 = sadd.s32 %s109, 1
    %s111 = scalar_select %p108, %s109, %s110
    %p114 = pneg %p108
    %p115 = scmp.eq.s32.totalorder %s10, 1
    %p116 = por %p114, %p115
    %p117 = scmp.ne.s32.totalorder %s109, %s112
    %p118 = scmp.eq.s32.totalorder %s10, 0
    %p119 = por %p117, %p118
    %p120 = scmp.ne.s32.totalorder %s109, %s112
    %p121 = scmp.eq.s32.totalorder %s15, 1
    %p122 = por %p120, %p121
    %p123 = scmp.ne.s32.totalorder %s112, %s113
    %p124 = scmp.eq.s32.totalorder %s15, 0
    %p125 = por %p123, %p124
    %p126 = scmp.ne.s32.totalorder %s112, %s113
    %p127 = scmp.eq.s32.totalorder %s16, 1
    %p128 = por %p126, %p127
    %p130 = scmp.ne.s32.totalorder %s113, %s129
    %p131 = scmp.eq.s32.totalorder %s16, 0
    %p132 = por %p130, %p131
    %p133 = scmp.le.s32.totalorder 1, %s10
    %p134 = scmp.lt.s32.totalorder %s10, 3
    %p135 = pnand %p133, %p134
    %p136 = pneg %p135
    // Predicated region
    $region9: #{linear_attention_pallas.1} parent=5 // pred_check
      _
    $region10: #{linear_attention_pallas.1} parent=5 // pred_check_branch
      %138 = sbr.rel (%p135) target = $region12
    $region11: #{linear_attention_pallas.1} parent=5 // pred_region
      %s139 = ssub.s32 %s10, 1
      // Predicated region
      $region13: #{linear_attention_pallas.1} parent=11 // pred_check
        %p140 = pneg %p57
      $region14: #{linear_attention_pallas.1} parent=11 // pred_check_branch
        %142 = sbr.rel (%p140) target = $region16
      $region15: #{linear_attention_pallas.1} parent=11 // pred_region
        _
      $region16: #{linear_attention_pallas.1} parent=11 // pred_fallthru
        _
      // Predicated region
      $region17: #{linear_attention_pallas.1} parent=11 // pred_check
        %p143 = pneg %p78
      $region18: #{linear_attention_pallas.1} parent=11 // pred_check_branch
        %145 = sbr.rel (%p143) target = $region20
      $region19: #{linear_attention_pallas.1} parent=11 // pred_region
        _
      $region20: #{linear_attention_pallas.1} parent=11 // pred_fallthru
        _
      // Predicated region
      $region21: #{linear_attention_pallas.1} parent=11 // pred_check
        %p146 = pneg %p99
      $region22: #{linear_attention_pallas.1} parent=11 // pred_check_branch
        %148 = sbr.rel (%p146) target = $region24
      $region23: #{linear_attention_pallas.1} parent=11 // pred_region
        _
      $region24: #{linear_attention_pallas.1} parent=11 // pred_fallthru
        _
    $region12: #{linear_attention_pallas.1} parent=5 // pred_fallthru
      _
    %p149 = scmp.lt.s32.totalorder %s10, 2
    // Predicated region
    $region25: #{linear_attention_pallas.1} parent=5 // pred_check
      %p150 = pneg %p149
    $region26: #{linear_attention_pallas.1} parent=5 // pred_check_branch
      %152 = sbr.rel (%p150) target = $region28
    $region27: #{linear_attention_pallas.1} parent=5 // pred_region
      // Predicated region
      $region29: #{linear_attention_pallas.1} parent=27 // pred_check
        %p153 = pneg %p30
      $region30: #{linear_attention_pallas.1} parent=27 // pred_check_branch
        %155 = sbr.rel (%p153) target = $region32
      $region31: #{linear_attention_pallas.1} parent=27 // pred_region
        %p156 = scmp.lt.s32.totalorder %s10, 1
        %s157 = scalar_select %p156, %s10, 1
        %s158 = smul.addr %s157, 2
        %s159 = smul.addr %s158, 2
        %s160 = scalar_lea.vmem %s0, %s159
      $region32: #{linear_attention_pallas.1} parent=27 // pred_fallthru
        _
    $region28: #{linear_attention_pallas.1} parent=5 // pred_fallthru
      _
    %p161 = scmp.le.s32.totalorder 1, %s10
    %p162 = scmp.lt.s32.totalorder %s10, 3
    %p163 = pnand %p161, %p162
    %p164 = pneg %p163
    // Predicated region
    $region33: #{linear_attention_pallas.1} parent=5 // pred_check
      _
    $region34: #{linear_attention_pallas.1} parent=5 // pred_check_branch
      %166 = sbr.rel (%p163) target = $region36
    $region35: #{linear_attention_pallas.1} parent=5 // pred_region
      %s167 = ssub.s32 %s10, 1
      %p168 = scmp.lt.s32.totalorder %s15, 1
      %s169 = scalar_select %p168, %s15, 1
      %s170 = smul.addr %s169, 2
      %s171 = smul.addr %s170, 2
      %s172 = scalar_lea.vmem %s0, %s171
      %p173 = pneg %p36
      %p174 = pneg %p33
      %p175 = pneg %p57
      %p176 = pneg %p54
      %p177 = pneg %p78
      %p178 = pneg %p75
      %p179 = pneg %p99
      %p180 = pneg %p96
      %p181 = pneg %p125
      %p182 = pneg %p122
      %p183 = scmp.lt.s32.totalorder %s15, 1
      %s184 = scalar_select %p183, %s15, 1
      %s185 = smul.addr %s184, 2
      %s186 = smul.addr %s185, 4
      %s187 = scalar_lea.vmem %s4, %s186
      %p188 = scmp.lt.s32.totalorder %s15, 1
      %s189 = scalar_select %p188, %s15, 1
      %s190 = smul.addr %s189, 2
      %s191 = smul.addr %s190, 2
      %s192 = scalar_lea.vmem %s0, %s191
      %p193 = scmp.lt.s32.totalorder %s15, 1
      %s194 = scalar_select %p193, %s15, 1
      %s195 = smul.addr %s194, 2
      %s196 = smul.addr %s195, 4
      %s197 = scalar_lea.vmem %s4, %s196
      %v199 = vld [vmem:[%s192] sm:$0xf]
      %v200 = vld [vmem:[%s1] sm:$0xf]
      %v201 = vld [vmem:[%s1 + $0x4] sm:$0xf]
      %v202 = vld [vmem:[%s1 + $0x8] sm:$0xf]
      %v203 = vld [vmem:[%s1 + $0xc] sm:$0xf]
      %v204 = vld [vmem:[%s1 + $0x10] sm:$0xf]
      %v205 = vld [vmem:[%s1 + $0x14] sm:$0xf]
      %v206 = vld [vmem:[%s1 + $0x18] sm:$0xf]
      %v207 = vld [vmem:[%s1 + $0x1c] sm:$0xf]
      %v208 = vld [vmem:[%s1 + $0x20] sm:$0xf]
      %v209 = vld [vmem:[%s1 + $0x24] sm:$0xf]
      %v210 = vld [vmem:[%s1 + $0x28] sm:$0xf]
      %v211 = vld [vmem:[%s1 + $0x2c] sm:$0xf]
      %v212 = vld [vmem:[%s1 + $0x30] sm:$0xf]
      %v213 = vld [vmem:[%s1 + $0x34] sm:$0xf]
      %v214 = vld [vmem:[%s1 + $0x38] sm:$0xf]
      %v215 = vld [vmem:[%s1 + $0x3c] sm:$0xf]
      %v216 = vld [vmem:[%s1 + $0x40] sm:$0xf]
      %v217 = vld [vmem:[%s1 + $0x44] sm:$0xf]
      %v218 = vld [vmem:[%s1 + $0x48] sm:$0xf]
      %v219 = vld [vmem:[%s1 + $0x4c] sm:$0xf]
      %v220 = vld [vmem:[%s1 + $0x50] sm:$0xf]
      %v221 = vld [vmem:[%s1 + $0x54] sm:$0xf]
      %v222 = vld [vmem:[%s1 + $0x58] sm:$0xf]
      %v223 = vld [vmem:[%s1 + $0x5c] sm:$0xf]
      %v224 = vld [vmem:[%s3] sm:$0xf]
      %v249 = vunpack.c.l.b16 %v200
      %v250 = vunpack.c.l.b16 %v201
      %v251 = vunpack.c.l.b16 %v202
      %v252 = vunpack.c.l.b16 %v203
      %v253 = vunpack.c.l.b16 %v204
      %v254 = vunpack.c.l.b16 %v205
      %v255 = vunpack.c.l.b16 %v206
      %v256 = vunpack.c.l.b16 %v207
      %v257 = vunpack.c.l.b16 %v208
      %v258 = vunpack.c.l.b16 %v209
      %v259 = vunpack.c.l.b16 %v210
      %v260 = vunpack.c.l.b16 %v211
      %v261 = vunpack.c.l.b16 %v212
      %v262 = vunpack.c.l.b16 %v213
      %v263 = vunpack.c.l.b16 %v214
      %v264 = vunpack.c.l.b16 %v215
      %v265 = vunpack.c.l.b16 %v216
      %v266 = vunpack.c.l.b16 %v217
      %v267 = vunpack.c.l.b16 %v218
      %v268 = vunpack.c.l.b16 %v219
      %v269 = vunpack.c.l.b16 %v220
      %v270 = vunpack.c.l.b16 %v221
      %v271 = vunpack.c.l.b16 %v222
      %v272 = vunpack.c.l.b16 %v223
      %v273 = vpack.c.b16 %v250, %v249
      %v274 = vpack.c.b16 %v252, %v251
      %v275 = vpack.c.b16 %v254, %v253
      %v276 = vpack.c.b16 %v256, %v255
      %v277 = vpack.c.b16 %v258, %v257
      %v278 = vpack.c.b16 %v260, %v259
      %v279 = vpack.c.b16 %v262, %v261
      %v280 = vpack.c.b16 %v264, %v263
      %v281 = vpack.c.b16 %v266, %v265
      %v282 = vpack.c.b16 %v268, %v267
      %v283 = vpack.c.b16 %v270, %v269
      %v284 = vpack.c.b16 %v272, %v271
      %v287 = vunpack.c.l.s4 1983009808
      %v288 = vunpack.c.0.s8 %v287
      %v289 = vlaneseq
      %v290 = vshrl.u32 %v289, 7
      %v291 = vsub.s32 %v288, %v290
      %v292 = vrot.slane %v199, %v291
      %v293 = vcombine.high %v292, %v292
      %vm294 = vcmask 31744
      %v296 = vsel %vm294, %v273, 0
      %v299 = vsel %vm294, %v274, 0
      %v302 = vsel %vm294, %v275, 0
      %v305 = vsel %vm294, %v276, 0
      %v308 = vsel %vm294, %v277, 0
      %v311 = vsel %vm294, %v278, 0
      %v314 = vsel %vm294, %v279, 0
      %v317 = vsel %vm294, %v280, 0
      %v320 = vsel %vm294, %v281, 0
      %v323 = vsel %vm294, %v282, 0
      %v326 = vsel %vm294, %v283, 0
      %v329 = vsel %vm294, %v284, 0
      %vm331 = vcmask 1041408
      %v333 = vsel %vm331, %v292, 0
      %v336 = vsel %vm331, %v293, 0
      %338 = vmatprep.subr.bf16.mxu0 %v336
      %339 = vmatpush1.bf16.msra.mxu0 %v333
      %340 = vmatprep.subr.bf16.mxu0 0
      %341 = vmatpush1.bf16.msra.mxu0 0
      %342 = vmatprep.subr.bf16.mxu0 0
      %343 = vmatpush1.bf16.msra.mxu0 0
      %344 = vmatprep.subr.bf16.mxu0 0
      %345 = vmatpush1.bf16.msra.mxu0 0
      %346 = vmatprep.subr.bf16.mxu0 0
      %347 = vmatpush1.bf16.msra.mxu0 0
      %348 = vmatprep.subr.bf16.mxu0 0
      %349 = vmatpush1.bf16.msra.mxu0 0
      %350 = vmatprep.subr.bf16.mxu0 0
      %351 = vmatpush1.bf16.msra.mxu0 0
      %352 = vmatprep.subr.bf16.mxu0 0
      %353 = vmatpush1.bf16.msra.mxu0 0
      %354 = vmatprep.subr.bf16.mxu0 0
      %355 = vmatpush1.bf16.msra.mxu0 0
      %356 = vmatprep.subr.bf16.mxu0 0
      %357 = vmatpush1.bf16.msra.mxu0 0
      %358 = vmatprep.subr.bf16.mxu0 0
      %359 = vmatpush1.bf16.msra.mxu0 0
      %360 = vmatprep.subr.bf16.mxu0 0
      %361 = vmatpush1.bf16.msra.mxu0 0
      %362 = vmatprep.subr.bf16.mxu0 0
      %363 = vmatpush1.bf16.msra.mxu0 0
      %364 = vmatprep.subr.bf16.mxu0 0
      %365 = vmatpush1.bf16.msra.mxu0 0
      %366 = vmatprep.subr.bf16.mxu0 0
      %367 = vmatpush1.bf16.msra.mxu0 0
      %368 = vmatprep.subr.bf16.mxu0 0
      %369 = vmatpush1.bf16.msra.mxu0 0
      %370 = vmatprep.mubr.bf16.mxu0 0
      %371 = vmatmul.mubr.bf16.gmra.mrb[0].mxu0 %v296
      %v372 = vpop.f32.mrb[0].mxu0
      %v373 = vadd.f32 0.0, %v372
      %v374 = vpop.f32.mrb[0].mxu0
      %v375 = vadd.f32 0.0, %v374
      %v376 = vpop.f32.mrb[0].mxu0
      %v377 = vadd.f32 0.0, %v376
      %v378 = vpop.f32.mrb[0].mxu0
      %v379 = vadd.f32 0.0, %v378
      %380 = vmatprep.mubr.bf16.mxu0 0
      %381 = vmatmul.mubr.bf16.gmra.mrb[0].mxu0 %v299
      %v382 = vpop.f32.mrb[0].mxu0
      %v383 = vadd.f32 0.0, %v382
      %v384 = vpop.f32.mrb[0].mxu0
      %v385 = vadd.f32 0.0, %v384
      %v386 = vpop.f32.mrb[0].mxu0
      %v387 = vadd.f32 0.0, %v386
      %v388 = vpop.f32.mrb[0].mxu0
      %v389 = vadd.f32 0.0, %v388
      %390 = vmatprep.mubr.bf16.mxu0 0
      %391 = vmatmul.mubr.bf16.gmra.mrb[0].mxu0 %v302
      %v392 = vpop.f32.mrb[0].mxu0
      %v393 = vadd.f32 0.0, %v392
      %v394 = vpop.f32.mrb[0].mxu0
      %v395 = vadd.f32 0.0, %v394
      %v396 = vpop.f32.mrb[0].mxu0
      %v397 = vadd.f32 0.0, %v396
      %v398 = vpop.f32.mrb[0].mxu0
      %v399 = vadd.f32 0.0, %v398
      %400 = vmatprep.mubr.bf16.mxu0 0
      %401 = vmatmul.mubr.bf16.gmra.mrb[0].mxu0 %v305
      %v402 = vpop.f32.mrb[0].mxu0
      %v403 = vadd.f32 0.0, %v402
      %v404 = vpop.f32.mrb[0].mxu0
      %v405 = vadd.f32 0.0, %v404
      %v406 = vpop.f32.mrb[0].mxu0
      %v407 = vadd.f32 0.0, %v406
      %v408 = vpop.f32.mrb[0].mxu0
      %v409 = vadd.f32 0.0, %v408
      %410 = vmatprep.mubr.bf16.mxu0 0
      %411 = vmatmul.mubr.bf16.gmra.mrb[0].mxu0 %v308
      %v412 = vpop.f32.mrb[0].mxu0
      %v413 = vadd.f32 0.0, %v412
      %v414 = vpop.f32.mrb[0].mxu0
      %v415 = vadd.f32 0.0, %v414
      %v416 = vpop.f32.mrb[0].mxu0
      %v417 = vadd.f32 0.0, %v416
      %v418 = vpop.f32.mrb[0].mxu0
      %v419 = vadd.f32 0.0, %v418
      %420 = vmatprep.mubr.bf16.mxu0 0
      %421 = vmatmul.mubr.bf16.gmra.mrb[0].mxu0 %v311
      %v422 = vpop.f32.mrb[0].mxu0
      %v423 = vadd.f32 0.0, %v422
      %v424 = vpop.f32.mrb[0].mxu0
      %v425 = vadd.f32 0.0, %v424
      %v426 = vpop.f32.mrb[0].mxu0
      %v427 = vadd.f32 0.0, %v426
      %v428 = vpop.f32.mrb[0].mxu0
      %v429 = vadd.f32 0.0, %v428
      %430 = vmatprep.mubr.bf16.mxu0 0
      %431 = vmatmul.mubr.bf16.gmra.mrb[0].mxu0 %v314
      %v432 = vpop.f32.mrb[0].mxu0
      %v433 = vadd.f32 0.0, %v432
      %v434 = vpop.f32.mrb[0].mxu0
      %v435 = vadd.f32 0.0, %v434
      %v436 = vpop.f32.mrb[0].mxu0
      %v437 = vadd.f32 0.0, %v436
      %v438 = vpop.f32.mrb[0].mxu0
      %v439 = vadd.f32 0.0, %v438
      %440 = vmatprep.mubr.bf16.mxu0 0
      %441 = vmatmul.mubr.bf16.gmra.mrb[0].mxu0 %v317
      %v442 = vpop.f32.mrb[0].mxu0
      %v443 = vadd.f32 0.0, %v442
      %v444 = vpop.f32.mrb[0].mxu0
      %v445 = vadd.f32 0.0, %v444
      %v446 = vpop.f32.mrb[0].mxu0
      %v447 = vadd.f32 0.0, %v446
      %v448 = vpop.f32.mrb[0].mxu0
      %v449 = vadd.f32 0.0, %v448
      %450 = vmatprep.mubr.bf16.mxu0 0
      %451 = vmatmul.mubr.bf16.gmra.mrb[0].mxu0 %v320
      %v452 = vpop.f32.mrb[0].mxu0
      %v453 = vadd.f32 0.0, %v452
      %v454 = vpop.f32.mrb[0].mxu0
      %v455 = vadd.f32 0.0, %v454
      %v456 = vpop.f32.mrb[0].mxu0
      %v457 = vadd.f32 0.0, %v456
      %v458 = vpop.f32.mrb[0].mxu0
      %v459 = vadd.f32 0.0, %v458
      %460 = vmatprep.mubr.bf16.mxu0 0
      %461 = vmatmul.mubr.bf16.gmra.mrb[0].mxu0 %v323
      %v462 = vpop.f32.mrb[0].mxu0
      %v463 = vadd.f32 0.0, %v462
      %v464 = vpop.f32.mrb[0].mxu0
      %v465 = vadd.f32 0.0, %v464
      %v466 = vpop.f32.mrb[0].mxu0
      %v467 = vadd.f32 0.0, %v466
      %v468 = vpop.f32.mrb[0].mxu0
      %v469 = vadd.f32 0.0, %v468
      %470 = vmatprep.mubr.bf16.mxu0 0
      %471 = vmatmul.mubr.bf16.gmra.mrb[0].mxu0 %v326
      %v472 = vpop.f32.mrb[0].mxu0
      %v473 = vadd.f32 0.0, %v472
      %v474 = vpop.f32.mrb[0].mxu0
      %v475 = vadd.f32 0.0, %v474
      %v476 = vpop.f32.mrb[0].mxu0
      %v477 = vadd.f32 0.0, %v476
      %v478 = vpop.f32.mrb[0].mxu0
      %v479 = vadd.f32 0.0, %v478
      %480 = vmatprep.mubr.bf16.mxu0 0
      %481 = vmatmul.mubr.bf16.gmra.mrb[0].mxu0 %v329
      %v482 = vpop.f32.mrb[0].mxu0
      %v483 = vadd.f32 0.0, %v482
      %v484 = vpop.f32.mrb[0].mxu0
      %v485 = vadd.f32 0.0, %v484
      %v486 = vpop.f32.mrb[0].mxu0
      %v487 = vadd.f32 0.0, %v486
      %v488 = vpop.f32.mrb[0].mxu0
      %v489 = vadd.f32 0.0, %v488
      %490 = vdwg.mxu0
      %v491 = vmax.f32 %v413, %v415
      %492 = vmax.xlane.f32.xlu0 %v491
      %v493 = vpop.xlane.xlu0 %492
      %v494 = vmax.f32 %v417, %v419
      %495 = vmax.xlane.f32.xlu0 %v494
      %v496 = vpop.xlane.xlu0 %495
      %v497 = vmax.f32 %v423, %v425
      %498 = vmax.xlane.f32.xlu0 %v497
      %v499 = vpop.xlane.xlu0 %498
      %v500 = vmax.f32 %v427, %v429
      %501 = vmax.xlane.f32.xlu0 %v500
      %v502 = vpop.xlane.xlu0 %501
      %v503 = vmax.f32 %v433, %v435
      %504 = vmax.xlane.f32.xlu0 %v503
      %v505 = vpop.xlane.xlu0 %504
      %v506 = vmax.f32 %v437, %v439
      %507 = vmax.xlane.f32.xlu0 %v506
      %v508 = vpop.xlane.xlu0 %507
      %v509 = vmax.f32 %v443, %v445
      %510 = vmax.xlane.f32.xlu0 %v509
      %v511 = vpop.xlane.xlu0 %510
      %v512 = vmax.f32 %v447, %v449
      %513 = vmax.xlane.f32.xlu0 %v512
      %v514 = vpop.xlane.xlu0 %513
      %v515 = vsub.f32 %v413, %v493
      %v516 = vsub.f32 %v415, %v493
      %v517 = vsub.f32 %v417, %v496
      %v518 = vsub.f32 %v419, %v496
      %v519 = vsub.f32 %v423, %v499
      %v520 = vsub.f32 %v425, %v499
      %v521 = vsub.f32 %v427, %v502
      %v522 = vsub.f32 %v429, %v502
      %v523 = vsub.f32 %v433, %v505
      %v524 = vsub.f32 %v435, %v505
      %v525 = vsub.f32 %v437, %v508
      %v526 = vsub.f32 %v439, %v508
      %v527 = vsub.f32 %v443, %v511
      %v528 = vsub.f32 %v445, %v511
      %v529 = vsub.f32 %v447, %v514
      %v530 = vsub.f32 %v449, %v514
      %v531 = vmul.f32 %v515, 1.442695
      %v532 = vpow.pop %v531
      %v533 = vmul.f32 %v516, 1.442695
      %v534 = vpow.pop %v533
      %v535 = vmul.f32 %v517, 1.442695
      %v536 = vpow.pop %v535
      %v537 = vmul.f32 %v518, 1.442695
      %v538 = vpow.pop %v537
      %v539 = vmul.f32 %v519, 1.442695
      %v540 = vpow.pop %v539
      %v541 = vmul.f32 %v520, 1.442695
      %v542 = vpow.pop %v541
      %v543 = vmul.f32 %v521, 1.442695
      %v544 = vpow.pop %v543
      %v545 = vmul.f32 %v522, 1.442695
      %v546 = vpow.pop %v545
      %v547 = vmul.f32 %v523, 1.442695
      %v548 = vpow.pop %v547
      %v549 = vmul.f32 %v524, 1.442695
      %v550 = vpow.pop %v549
      %v551 = vmul.f32 %v525, 1.442695
      %v552 = vpow.pop %v551
      %v553 = vmul.f32 %v526, 1.442695
      %v554 = vpow.pop %v553
      %v555 = vmul.f32 %v527, 1.442695
      %v556 = vpow.pop %v555
      %v557 = vmul.f32 %v528, 1.442695
      %v558 = vpow.pop %v557
      %v559 = vmul.f32 %v529, 1.442695
      %v560 = vpow.pop %v559
      %v561 = vmul.f32 %v530, 1.442695
      %v562 = vpow.pop %v561
      %v563 = vadd.f32 %v532, %v534
      %564 = vadd.xlane.f32.xlu0 %v563
      %v565 = vpop.xlane.xlu0 %564
      %v566 = vadd.f32 %v536, %v538
      %567 = vadd.xlane.f32.xlu0 %v566
      %v568 = vpop.xlane.xlu0 %567
      %v569 = vadd.f32 %v540, %v542
      %570 = vadd.xlane.f32.xlu0 %v569
      %v571 = vpop.xlane.xlu0 %570
      %v572 = vadd.f32 %v544, %v546
      %573 = vadd.xlane.f32.xlu0 %v572
      %v574 = vpop.xlane.xlu0 %573
      %v575 = vadd.f32 %v548, %v550
      %576 = vadd.xlane.f32.xlu0 %v575
      %v577 = vpop.xlane.xlu0 %576
      %v578 = vadd.f32 %v552, %v554
      %579 = vadd.xlane.f32.xlu0 %v578
      %v580 = vpop.xlane.xlu0 %579
      %v581 = vadd.f32 %v556, %v558
      %582 = vadd.xlane.f32.xlu0 %v581
      %v583 = vpop.xlane.xlu0 %582
      %v584 = vadd.f32 %v560, %v562
      %585 = vadd.xlane.f32.xlu0 %v584
      %v586 = vpop.xlane.xlu0 %585
      %v587 = vrcp.pop %v565
      %v588 = vrcp.pop %v568
      %v589 = vrcp.pop %v571
      %v590 = vrcp.pop %v574
      %v591 = vrcp.pop %v577
      %v592 = vrcp.pop %v580
      %v593 = vrcp.pop %v583
      %v594 = vrcp.pop %v586
      %v595 = vmul.f32 %v532, %v587
      %v596 = vmul.f32 %v534, %v587
      %v597 = vmul.f32 %v536, %v588
      %v598 = vmul.f32 %v538, %v588
      %v599 = vmul.f32 %v540, %v589
      %v600 = vmul.f32 %v542, %v589
      %v601 = vmul.f32 %v544, %v590
      %v602 = vmul.f32 %v546, %v590
      %v603 = vmul.f32 %v548, %v591
      %v604 = vmul.f32 %v550, %v591
      %v605 = vmul.f32 %v552, %v592
      %v606 = vmul.f32 %v554, %v592
      %v607 = vmul.f32 %v556, %v593
      %v608 = vmul.f32 %v558, %v593
      %v609 = vmul.f32 %v560, %v594
      %v610 = vmul.f32 %v562, %v594
      %v611 = vpack.c.bf16 %v377, %v373
      %v612 = vpack.c.bf16 %v379, %v375
      %v613 = vpack.c.bf16 %v387, %v383
      %v614 = vpack.c.bf16 %v389, %v385
      %v615 = vpack.c.bf16 %v397, %v393
      %v616 = vpack.c.bf16 %v399, %v395
      %v617 = vpack.c.bf16 %v407, %v403
      %v618 = vpack.c.bf16 %v409, %v405
      %v619 = vpack.c.bf16 %v597, %v595
      %v620 = vpack.c.bf16 %v598, %v596
      %v621 = vpack.c.bf16 %v601, %v599
      %v622 = vpack.c.bf16 %v602, %v600
      %v623 = vpack.c.bf16 %v605, %v603
      %v624 = vpack.c.bf16 %v606, %v604
      %v625 = vpack.c.bf16 %v609, %v607
      %v626 = vpack.c.bf16 %v610, %v608
      %v627 = vpack.c.bf16 %v457, %v453
      %v628 = vpack.c.bf16 %v459, %v455
      %v629 = vpack.c.bf16 %v467, %v463
      %v630 = vpack.c.bf16 %v469, %v465
      %v631 = vpack.c.bf16 %v477, %v473
      %v632 = vpack.c.bf16 %v479, %v475
      %v633 = vpack.c.bf16 %v487, %v483
      %v634 = vpack.c.bf16 %v489, %v485
      %v635 = vld [vmem:[%s2] sm:$0x3]
      %636 = vmatprep.subr.bf16.mxu0 %v628
      %637 = vmatpush1.bf16.xpose.msra.mxu0 %v627
      %638 = vmatprep.subr.bf16.mxu0 %v630
      %639 = vmatpush1.bf16.xpose.msra.mxu0 %v629
      %640 = vmatprep.subr.bf16.mxu0 0
      %641 = vmatpush1.bf16.xpose.msra.mxu0 0
      %642 = vmatprep.subr.bf16.mxu0 0
      %643 = vmatpush1.bf16.xpose.msra.mxu0 0
      %644 = vmatprep.subr.bf16.mxu0 0
      %645 = vmatpush1.bf16.xpose.msra.mxu0 0
      %646 = vmatprep.subr.bf16.mxu0 0
      %647 = vmatpush1.bf16.xpose.msra.mxu0 0
      %648 = vmatprep.subr.bf16.mxu0 0
      %649 = vmatpush1.bf16.xpose.msra.mxu0 0
      %650 = vmatprep.subr.bf16.mxu0 0
      %651 = vmatpush1.bf16.xpose.msra.mxu0 0
      %652 = vmatprep.subr.bf16.mxu0 0
      %653 = vmatpush1.bf16.xpose.msra.mxu0 0
      %654 = vmatprep.subr.bf16.mxu0 0
      %655 = vmatpush1.bf16.xpose.msra.mxu0 0
      %656 = vmatprep.subr.bf16.mxu0 0
      %657 = vmatpush1.bf16.xpose.msra.mxu0 0
      %658 = vmatprep.subr.bf16.mxu0 0
      %659 = vmatpush1.bf16.xpose.msra.mxu0 0
      %660 = vmatprep.subr.bf16.mxu0 0
      %661 = vmatpush1.bf16.xpose.msra.mxu0 0
      %662 = vmatprep.subr.bf16.mxu0 0
      %663 = vmatpush1.bf16.xpose.msra.mxu0 0
      %664 = vmatprep.subr.bf16.mxu0 0
      %665 = vmatpush1.bf16.xpose.msra.mxu0 0
      %666 = vmatprep.subr.bf16.mxu0 0
      %667 = vmatpush1.bf16.xpose.msra.mxu0 0
      %668 = vmatprep.mubr.bf16.mxu0 %v620
      %669 = vmatmul.mubr.bf16.gmra.mrb[0].mxu0 %v619
      %v670 = vpop.f32.mrb[0].mxu0
      %v671 = vadd.f32 0.0, %v670
      %v672 = vpop.f32.mrb[0].mxu0
      %v673 = vpop.f32.mrb[0].mxu0
      %v674 = vadd.f32 0.0, %v673
      %v675 = vpop.f32.mrb[0].mxu0
      %676 = vmatprep.mubr.bf16.mxu0 %v622
      %677 = vmatmul.mubr.bf16.gmra.mrb[0].mxu0 %v621
      %v678 = vpop.f32.mrb[0].mxu0
      %v679 = vadd.f32 0.0, %v678
      %v680 = vpop.f32.mrb[0].mxu0
      %v681 = vpop.f32.mrb[0].mxu0
      %v682 = vadd.f32 0.0, %v681
      %v683 = vpop.f32.mrb[0].mxu0
      %684 = vdwg.mxu0
      %v685 = vpack.c.bf16 %v674, %v671
      %v686 = vpack.c.bf16 %v682, %v679
      %vm687 = vcmask 261120
      %v689 = vsel %vm687, %v635, 0
      %v692 = vsel %vm687, %v685, 0
      %v695 = vsel %vm687, %v686, 0
      %697 = vmatprep.subr.bf16.mxu0 0
      %698 = vmatpush1.bf16.xpose.msra.mxu0 %v692
      %699 = vmatprep.subr.bf16.mxu0 0
      %700 = vmatpush1.bf16.xpose.msra.mxu0 %v695
      %701 = vmatprep.subr.bf16.mxu0 0
      %702 = vmatpush1.bf16.xpose.msra.mxu0 0
      %703 = vmatprep.subr.bf16.mxu0 0
      %704 = vmatpush1.bf16.xpose.msra.mxu0 0
      %705 = vmatprep.subr.bf16.mxu0 0
      %706 = vmatpush1.bf16.xpose.msra.mxu0 0
      %707 = vmatprep.subr.bf16.mxu0 0
      %708 = vmatpush1.bf16.xpose.msra.mxu0 0
      %709 = vmatprep.subr.bf16.mxu0 0
      %710 = vmatpush1.bf16.xpose.msra.mxu0 0
      %711 = vmatprep.subr.bf16.mxu0 0
      %712 = vmatpush1.bf16.xpose.msra.mxu0 0
      %713 = vmatprep.subr.bf16.mxu0 0
      %714 = vmatpush1.bf16.xpose.msra.mxu0 0
      %715 = vmatprep.subr.bf16.mxu0 0
      %716 = vmatpush1.bf16.xpose.msra.mxu0 0
      %717 = vmatprep.subr.bf16.mxu0 0
      %718 = vmatpush1.bf16.xpose.msra.mxu0 0
      %719 = vmatprep.subr.bf16.mxu0 0
      %720 = vmatpush1.bf16.xpose.msra.mxu0 0
      %721 = vmatprep.subr.bf16.mxu0 0
      %722 = vmatpush1.bf16.xpose.msra.mxu0 0
      %723 = vmatprep.subr.bf16.mxu0 0
      %724 = vmatpush1.bf16.xpose.msra.mxu0 0
      %725 = vmatprep.subr.bf16.mxu0 0
      %726 = vmatpush1.bf16.xpose.msra.mxu0 0
      %727 = vmatprep.subr.bf16.mxu0 0
      %728 = vmatpush1.bf16.xpose.msra.mxu0 0
      %729 = vmatprep.mubr.bf16.mxu0 0
      %730 = vmatmul.mubr.bf16.gmra.mrb[0].mxu0 %v689
      %v731 = vpop.f32.mrb[0].mxu0
      %v732 = vadd.f32 0.0, %v731
      %v733 = vpop.f32.mrb[0].mxu0
      %v734 = vpop.f32.mrb[0].mxu0
      %v735 = vpop.f32.mrb[0].mxu0
      %736 = vdwg.mxu0
      %v737 = vpack.c.bf16 %v732, %v732
      %s738 = scalar_lea.vmem %s2, 2
      %v739 = vld [vmem:[%s738] sm:$0x3]
      %740 = vmatprep.subr.bf16.mxu0 %v632
      %741 = vmatpush1.bf16.xpose.msra.mxu0 %v631
      %742 = vmatprep.subr.bf16.mxu0 %v634
      %743 = vmatpush1.bf16.xpose.msra.mxu0 %v633
      %744 = vmatprep.subr.bf16.mxu0 0
      %745 = vmatpush1.bf16.xpose.msra.mxu0 0
      %746 = vmatprep.subr.bf16.mxu0 0
      %747 = vmatpush1.bf16.xpose.msra.mxu0 0
      %748 = vmatprep.subr.bf16.mxu0 0
      %749 = vmatpush1.bf16.xpose.msra.mxu0 0
      %750 = vmatprep.subr.bf16.mxu0 0
      %751 = vmatpush1.bf16.xpose.msra.mxu0 0
      %752 = vmatprep.subr.bf16.mxu0 0
      %753 = vmatpush1.bf16.xpose.msra.mxu0 0
      %754 = vmatprep.subr.bf16.mxu0 0
      %755 = vmatpush1.bf16.xpose.msra.mxu0 0
      %756 = vmatprep.subr.bf16.mxu0 0
      %757 = vmatpush1.bf16.xpose.msra.mxu0 0
      %758 = vmatprep.subr.bf16.mxu0 0
      %759 = vmatpush1.bf16.xpose.msra.mxu0 0
      %760 = vmatprep.subr.bf16.mxu0 0
      %761 = vmatpush1.bf16.xpose.msra.mxu0 0
      %762 = vmatprep.subr.bf16.mxu0 0
      %763 = vmatpush1.bf16.xpose.msra.mxu0 0
      %764 = vmatprep.subr.bf16.mxu0 0
      %765 = vmatpush1.bf16.xpose.msra.mxu0 0
      %766 = vmatprep.subr.bf16.mxu0 0
      %767 = vmatpush1.bf16.xpose.msra.mxu0 0
      %768 = vmatprep.subr.bf16.mxu0 0
      %769 = vmatpush1.bf16.xpose.msra.mxu0 0
      %770 = vmatprep.subr.bf16.mxu0 0
      %771 = vmatpush1.bf16.xpose.msra.mxu0 0
      %772 = vmatprep.mubr.bf16.mxu0 %v624
      %773 = vmatmul.mubr.bf16.gmra.mrb[0].mxu0 %v623
      %v774 = vpop.f32.mrb[0].mxu0
      %v775 = vadd.f32 0.0, %v774
      %v776 = vpop.f32.mrb[0].mxu0
      %v777 = vpop.f32.mrb[0].mxu0
      %v778 = vadd.f32 0.0, %v777
      %v779 = vpop.f32.mrb[0].mxu0
      %780 = vmatprep.mubr.bf16.mxu0 %v626
      %781 = vmatmul.mubr.bf16.gmra.mrb[0].mxu0 %v625
      %v782 = vpop.f32.mrb[0].mxu0
      %v783 = vadd.f32 0.0, %v782
      %v784 = vpop.f32.mrb[0].mxu0
      %v785 = vpop.f32.mrb[0].mxu0
      %v786 = vadd.f32 0.0, %v785
      %v787 = vpop.f32.mrb[0].mxu0
      %788 = vdwg.mxu0
      %v789 = vpack.c.bf16 %v778, %v775
      %v790 = vpack.c.bf16 %v786, %v783
      %v792 = vsel %vm687, %v739, 0
      %v795 = vsel %vm687, %v789, 0
      %v798 = vsel %vm687, %v790, 0
      %800 = vmatprep.subr.bf16.mxu0 0
      %801 = vmatpush1.bf16.xpose.msra.mxu0 %v795
      %802 = vmatprep.subr.bf16.mxu0 0
      %803 = vmatpush1.bf16.xpose.msra.mxu0 %v798
      %804 = vmatprep.subr.bf16.mxu0 0
      %805 = vmatpush1.bf16.xpose.msra.mxu0 0
      %806 = vmatprep.subr.bf16.mxu0 0
      %807 = vmatpush1.bf16.xpose.msra.mxu0 0
      %808 = vmatprep.subr.bf16.mxu0 0
      %809 = vmatpush1.bf16.xpose.msra.mxu0 0
      %810 = vmatprep.subr.bf16.mxu0 0
      %811 = vmatpush1.bf16.xpose.msra.mxu0 0
      %812 = vmatprep.subr.bf16.mxu0 0
      %813 = vmatpush1.bf16.xpose.msra.mxu0 0
      %814 = vmatprep.subr.bf16.mxu0 0
      %815 = vmatpush1.bf16.xpose.msra.mxu0 0
      %816 = vmatprep.subr.bf16.mxu0 0
      %817 = vmatpush1.bf16.xpose.msra.mxu0 0
      %818 = vmatprep.subr.bf16.mxu0 0
      %819 = vmatpush1.bf16.xpose.msra.mxu0 0
      %820 = vmatprep.subr.bf16.mxu0 0
      %821 = vmatpush1.bf16.xpose.msra.mxu0 0
      %822 = vmatprep.subr.bf16.mxu0 0
      %823 = vmatpush1.bf16.xpose.msra.mxu0 0
      %824 = vmatprep.subr.bf16.mxu0 0
      %825 = vmatpush1.bf16.xpose.msra.mxu0 0
      %826 = vmatprep.subr.bf16.mxu0 0
      %827 = vmatpush1.bf16.xpose.msra.mxu0 0
      %828 = vmatprep.subr.bf16.mxu0 0
      %829 = vmatpush1.bf16.xpose.msra.mxu0 0
      %830 = vmatprep.subr.bf16.mxu0 0
      %831 = vmatpush1.bf16.xpose.msra.mxu0 0
      %832 = vmatprep.mubr.bf16.mxu0 0
      %833 = vmatmul.mubr.bf16.gmra.mrb[0].mxu0 %v792
      %v834 = vpop.f32.mrb[0].mxu0
      %v835 = vadd.f32 0.0, %v834
      %v836 = vpop.f32.mrb[0].mxu0
      %v837 = vpop.f32.mrb[0].mxu0
      %v838 = vpop.f32.mrb[0].mxu0
      %839 = vdwg.mxu0
      %v840 = vpack.c.bf16 %v835, %v835
      %v842 = vsel %vm687, %v840, 0
      %844 = vmatprep.subr.bf16.mxu0 %v616
      %845 = vmatpush1.bf16.msra.mxu0 %v615
      %846 = vmatprep.subr.bf16.mxu0 %v618
      %847 = vmatpush1.bf16.msra.mxu0 %v617
      %848 = vmatprep.subr.bf16.mxu0 0
      %849 = vmatpush1.bf16.msra.mxu0 0
      %850 = vmatprep.subr.bf16.mxu0 0
      %851 = vmatpush1.bf16.msra.mxu0 0
      %852 = vmatprep.subr.bf16.mxu0 0
      %853 = vmatpush1.bf16.msra.mxu0 0
      %854 = vmatprep.subr.bf16.mxu0 0
      %855 = vmatpush1.bf16.msra.mxu0 0
      %856 = vmatprep.subr.bf16.mxu0 0
      %857 = vmatpush1.bf16.msra.mxu0 0
      %858 = vmatprep.subr.bf16.mxu0 0
      %859 = vmatpush1.bf16.msra.mxu0 0
      %860 = vmatprep.subr.bf16.mxu0 0
      %861 = vmatpush1.bf16.msra.mxu0 0
      %862 = vmatprep.subr.bf16.mxu0 0
      %863 = vmatpush1.bf16.msra.mxu0 0
      %864 = vmatprep.subr.bf16.mxu0 0
      %865 = vmatpush1.bf16.msra.mxu0 0
      %866 = vmatprep.subr.bf16.mxu0 0
      %867 = vmatpush1.bf16.msra.mxu0 0
      %868 = vmatprep.subr.bf16.mxu0 0
      %869 = vmatpush1.bf16.msra.mxu0 0
      %870 = vmatprep.subr.bf16.mxu0 0
      %871 = vmatpush1.bf16.msra.mxu0 0
      %872 = vmatprep.subr.bf16.mxu0 0
      %873 = vmatpush1.bf16.msra.mxu0 0
      %874 = vmatprep.subr.bf16.mxu0 0
      %875 = vmatpush1.bf16.msra.mxu0 0
      %876 = vmatprep.mubr.bf16.mxu0 0
      %877 = vmatmul.mubr.bf16.gmra.mrb[0].mxu0 %v842
      %v878 = vpop.f32.mrb[0].mxu0
      %v879 = vadd.f32 0.0, %v878
      %v880 = vpop.f32.mrb[0].mxu0
      %v881 = vadd.f32 0.0, %v880
      %v882 = vpop.f32.mrb[0].mxu0
      %v883 = vpop.f32.mrb[0].mxu0
      %884 = vdwg.mxu0
      %v886 = vsel %vm687, %v737, 0
      %888 = vmatprep.subr.bf16.mxu0 %v612
      %889 = vmatpush1.bf16.msra.mxu0 %v611
      %890 = vmatprep.subr.bf16.mxu0 %v614
      %891 = vmatpush1.bf16.msra.mxu0 %v613
      %892 = vmatprep.subr.bf16.mxu0 0
      %893 = vmatpush1.bf16.msra.mxu0 0
      %894 = vmatprep.subr.bf16.mxu0 0
      %895 = vmatpush1.bf16.msra.mxu0 0
      %896 = vmatprep.subr.bf16.mxu0 0
      %897 = vmatpush1.bf16.msra.mxu0 0
      %898 = vmatprep.subr.bf16.mxu0 0
      %899 = vmatpush1.bf16.msra.mxu0 0
      %900 = vmatprep.subr.bf16.mxu0 0
      %901 = vmatpush1.bf16.msra.mxu0 0
      %902 = vmatprep.subr.bf16.mxu0 0
      %903 = vmatpush1.bf16.msra.mxu0 0
      %904 = vmatprep.subr.bf16.mxu0 0
      %905 = vmatpush1.bf16.msra.mxu0 0
      %906 = vmatprep.subr.bf16.mxu0 0
      %907 = vmatpush1.bf16.msra.mxu0 0
      %908 = vmatprep.subr.bf16.mxu0 0
      %909 = vmatpush1.bf16.msra.mxu0 0
      %910 = vmatprep.subr.bf16.mxu0 0
      %911 = vmatpush1.bf16.msra.mxu0 0
      %912 = vmatprep.subr.bf16.mxu0 0
      %913 = vmatpush1.bf16.msra.mxu0 0
      %914 = vmatprep.subr.bf16.mxu0 0
      %915 = vmatpush1.bf16.msra.mxu0 0
      %916 = vmatprep.subr.bf16.mxu0 0
      %917 = vmatpush1.bf16.msra.mxu0 0
      %918 = vmatprep.subr.bf16.mxu0 0
      %919 = vmatpush1.bf16.msra.mxu0 0
      %920 = vmatprep.mubr.bf16.mxu0 0
      %921 = vmatmul.mubr.bf16.gmra.mrb[0].mxu0 %v886
      %v922 = vpop.f32.mrb[0].mxu0
      %v923 = vadd.f32 %v879, %v922
      %v924 = vpop.f32.mrb[0].mxu0
      %v925 = vadd.f32 %v881, %v924
      %v926 = vpop.f32.mrb[0].mxu0
      %v927 = vpop.f32.mrb[0].mxu0
      %928 = vdwg.mxu0
      %930 = vset.pattern.permute.xlu0 0
      %931 = vperm.xlu0 %930, %v224
      %v932 = vpop.permute.xlu0 %931
      %v934 = vadd.f32 %v923, %v932
      %v935 = vadd.f32 %v925, %v932
      %v938 = vcombine.low %v934, %v935
      %940 = vst [vmem:[%s197] sm:$0xff] %v938
      %p941 = scmp.lt.s32.totalorder %s15, 1
      %s942 = scalar_select %p941, %s15, 1
      %s943 = smul.addr %s942, 2
      %s944 = smul.addr %s943, 4
      %s945 = scalar_lea.vmem %s4, %s944
      // Predicated region
      $region37: #{linear_attention_pallas.1} parent=35 // pred_check
        %p946 = pneg %p122
      $region38: #{linear_attention_pallas.1} parent=35 // pred_check_branch
        %948 = sbr.rel (%p946) target = $region40
      $region39: #{linear_attention_pallas.1} parent=35 // pred_region
        _
      $region40: #{linear_attention_pallas.1} parent=35 // pred_fallthru
        _
    $region36: #{linear_attention_pallas.1} parent=5 // pred_fallthru
      _
    %p949 = scmp.le.s32.totalorder 2, %s10
    // Predicated region
    $region41: #{linear_attention_pallas.1} parent=5 // pred_check
      %p950 = pneg %p949
    $region42: #{linear_attention_pallas.1} parent=5 // pred_check_branch
      %952 = sbr.rel (%p950) target = $region44
    $region43: #{linear_attention_pallas.1} parent=5 // pred_region
      %s953 = ssub.s32 %s10, 2
      // Predicated region
      $region45: #{linear_attention_pallas.1} parent=43 // pred_check
        %p954 = pneg %p128
      $region46: #{linear_attention_pallas.1} parent=43 // pred_check_branch
        %956 = sbr.rel (%p954) target = $region48
      $region47: #{linear_attention_pallas.1} parent=43 // pred_region
        %p957 = scmp.lt.s32.totalorder %s16, 1
        %s958 = scalar_select %p957, %s16, 1
        %s959 = smul.addr %s958, 2
        %s960 = smul.addr %s959, 4
        %s961 = scalar_lea.vmem %s4, %s960
      $region48: #{linear_attention_pallas.1} parent=43 // pred_fallthru
        _
    $region44: #{linear_attention_pallas.1} parent=5 // pred_fallthru
      _
  $region6: #{linear_attention_pallas.1} parent=0 // loop_footer
    %s14 = sadd.s32 1, %s10
  $region7: #{linear_attention_pallas.1} parent=0 // loop_footer_branch
    %9 = sbr.rel target = $region3
  $region8: #{linear_attention_pallas.1} parent=0 // loop_exit
    _

</llo_original>
